<compile_context>
chip_gen: v7x
topology: tpu7x:2x2x1
jax: 0.10.0
libtpu: 0.0.40
codegen_flags: <defaults>
</compile_context>

<pallas_src>
import jax
import jax.numpy as jnp
from jax.experimental import pallas as pl
from jax.experimental.pallas import tpu as pltpu

EPS = 1e-6   # matches the module: BatchNorm1d(..., eps=1e-06)


def _make_kernel(sizes):
    """Kernel for one instance.

    sizes = [dim, h_0, ..., h_{k-1}, dim]  -- static layer widths.
    Refs: x (B, dim), w_packed (L, max_d, max_d), gb_packed (L+1, 2, max_d),
          out (B, dim).
    """
    num_dense = len(sizes) - 1

    def kernel(x_ref, w_ref, gb_ref, o_ref):
        def bn(h, j):
            f = h.shape[-1]
            g = gb_ref[j, 0:1, :f]                       # (1, f)
            b = gb_ref[j, 1:2, :f]                       # (1, f)
            mean = jnp.mean(h, axis=0, keepdims=True)
            var = jnp.mean((h - mean) ** 2, axis=0, keepdims=True)   # biased
            scale = g * jax.lax.rsqrt(var + EPS)         # fold affine into scale/bias
            bias = b - mean * scale
            return h * scale + bias                      # 1 mul + 1 add per element

        h = x_ref[...].astype(jnp.float32)
        h = bn(h, 0)                                     # input batch-norm
        for i in range(num_dense - 1):                   # Linear -> BN -> ReLU
            fin, fout = sizes[i], sizes[i + 1]
            w = w_ref[i, :fin, :fout]
            h = jnp.dot(h, w, preferred_element_type=jnp.float32)
            h = bn(h, i + 1)
            h = jnp.maximum(h, 0.0)
        fin, fout = sizes[-2], sizes[-1]                 # final Linear -> BN
        w = w_ref[num_dense - 1, :fin, :fout]
        h = jnp.dot(h, w, preferred_element_type=jnp.float32)
        h = bn(h, num_dense)
        o_ref[...] = h.astype(o_ref.dtype)

    return kernel


def pack_params(weights, gammas, betas):
    """Pack per-layer parameters into two dense slabs (once, outside the kernel)."""
    num_dense = len(weights)
    sizes = [weights[0].shape[0]] + [w.shape[1] for w in weights]
    max_d = max(sizes)

    w_packed = jnp.zeros((num_dense, max_d, max_d), jnp.float32)
    for i, w in enumerate(weights):
        w_packed = w_packed.at[i, : w.shape[0], : w.shape[1]].set(w)

    num_bn = num_dense + 1
    gb_packed = jnp.zeros((num_bn, 2, max_d), jnp.float32)
    for j, (g, b) in enumerate(zip(gammas, betas)):
        f = g.shape[-1]
        gb_packed = gb_packed.at[j, 0, :f].set(jnp.reshape(g, (-1,)))
        gb_packed = gb_packed.at[j, 1, :f].set(jnp.reshape(b, (-1,)))
    return w_packed, gb_packed, sizes


def feedforward_nn_pallas(x, weights, gammas, betas):
    """Run the network with a single Pallas call.

    x: (batch, dim)                 -> one forward pass (grid of 1), or
       (num_instances, batch, dim)  -> one independent forward per instance
                                       (grid axis, "parallel" semantics).
    BatchNorm statistics are computed over the batch axis of each instance,
    matching the PyTorch training-mode forward.
    """
    squeeze = x.ndim == 2
    if squeeze:
        x = x[None]
    n_inst, batch, dim = x.shape

    w_packed, gb_packed, sizes = pack_params(weights, gammas, betas)
    kernel = _make_kernel(sizes)

    out = pl.pallas_call(
        kernel,
        out_shape=jax.ShapeDtypeStruct((n_inst, batch, dim), x.dtype),
        grid_spec=pltpu.PrefetchScalarGridSpec(
            num_scalar_prefetch=0,
            grid=(n_inst,),
            in_specs=[
                # per-instance activations
                pl.BlockSpec((None, batch, dim), lambda i: (i, 0, 0)),
                # packed parameters: constant index_map -> DMA'd once, VMEM-resident
                pl.BlockSpec(w_packed.shape, lambda i: (0, 0, 0)),
                pl.BlockSpec(gb_packed.shape, lambda i: (0, 0, 0)),
            ],
            out_specs=pl.BlockSpec((None, batch, dim), lambda i: (i, 0, 0)),
        ),
        compiler_params=pltpu.CompilerParams(
            dimension_semantics=("parallel",),
        ),
    )(x, w_packed, gb_packed)
    return out[0] if squeeze else out


def feedforward_nn_ref(x, weights, gammas, betas):
    """Pure-JAX reference (single instance) for correctness checking."""
    def bn(h, g, b):
        mean = jnp.mean(h, axis=0, keepdims=True)
        var = jnp.mean((h - mean) ** 2, axis=0, keepdims=True)
        return g * (h - mean) * jax.lax.rsqrt(var + EPS) + b

    h = bn(x, gammas[0], betas[0])
    for i in range(len(weights) - 1):
        h = h @ weights[i]
        h = bn(h, gammas[i + 1], betas[i + 1])
        h = jnp.maximum(h, 0.0)
    h = h @ weights[-1]
    h = bn(h, gammas[-1], betas[-1])
    return h


def init_params(key, dim, num_hiddens):
    """Deterministic parameter init mirroring the PyTorch module's shapes."""
    sizes = [dim] + list(num_hiddens) + [dim]          # dense in/out chain
    bn_feats = [dim] + list(num_hiddens) + [dim]       # L+1 batch-norm layers

    weights = []
    for fan_in, fan_out in zip(sizes[:-1], sizes[1:]):
        key, sub = jax.random.split(key)
        bound = 1.0 / jnp.sqrt(jnp.float32(fan_in))
        weights.append(jax.random.uniform(
            sub, (fan_in, fan_out), jnp.float32, minval=-bound, maxval=bound))

    gammas, betas = [], []
    for f in bn_feats:
        key, sub_g = jax.random.split(key)
        key, sub_b = jax.random.split(key)
        gammas.append(1.0 + 0.1 * jax.random.normal(sub_g, (1, f), jnp.float32))
        betas.append(0.1 * jax.random.normal(sub_b, (1, f), jnp.float32))
    return weights, gammas, betas


if __name__ == "__main__":
    # config: eqn dim = 8, num_hiddens = [32, 16] -> 3 dense layers, 4 BN layers
    dim = 8
    num_hiddens = [32, 16]
    batch = 16
    n_inst = 4          # independent forward passes (grid axis)

    key = jax.random.PRNGKey(0)
    key, kx = jax.random.split(key)
    x = jax.random.normal(kx, (n_inst, batch, dim), jnp.float32)

    weights, gammas, betas = init_params(key, dim, num_hiddens)

    # batched (gridded) call
    out = jax.block_until_ready(feedforward_nn_pallas(x, weights, gammas, betas))
    ref = jax.vmap(lambda xi: feedforward_nn_ref(xi, weights, gammas, betas))(x)
    assert out.shape == (n_inst, batch, dim)
    assert jnp.allclose(out, ref, atol=1e-4, rtol=1e-4), "mismatch vs reference (batched)"

    # single-instance call (exact original-module layout)
    out1 = jax.block_until_ready(feedforward_nn_pallas(x[0], weights, gammas, betas))
    assert out1.shape == (batch, dim)
    assert jnp.allclose(out1, ref[0], atol=1e-4, rtol=1e-4), "mismatch vs reference (single)"

    print("KERNEL_OK")
</pallas_src>

<mosaic_0001>
module attributes {stable_mosaic.version = 11 : i64} {
  func.func @kernel(%arg0: i32, %arg1: memref<1x16x8xf32, #tpu.memory_space<vmem>>, %arg2: memref<3x32x32xf32, #tpu.memory_space<vmem>>, %arg3: memref<4x2x32xf32, #tpu.memory_space<vmem>>, %arg4: memref<1x16x8xf32, #tpu.memory_space<vmem>>) attributes {dimension_semantics = [#tpu.dimension_semantics<parallel>], iteration_bounds = array<i64: 4>, scalar_prefetch = 0 : i64, scratch_operands = 0 : i64, tpu.core_type = #tpu.core_type<tc>, window_params = [{transform_indices = @transform_0, window_bounds = array<i64: 1, 16, 8>}, {pipeline_mode = #tpu.pipeline_mode<synchronous>, transform_indices = @transform_1, window_bounds = array<i64: 3, 32, 32>}, {pipeline_mode = #tpu.pipeline_mode<synchronous>, transform_indices = @transform_2, window_bounds = array<i64: 4, 2, 32>}, {transform_indices = @transform_3, window_bounds = array<i64: 1, 16, 8>}]} {
    %c0 = arith.constant 0 : index
    %c0_0 = arith.constant 0 : index
    %c0_1 = arith.constant 0 : index
    %0 = vector.load %arg1[%c0, %c0_0, %c0_1] : memref<1x16x8xf32, #tpu.memory_space<vmem>>, vector<1x16x8xf32>
    %1 = vector.shape_cast %0 : vector<1x16x8xf32> to vector<16x8xf32>
    %c0_2 = arith.constant 0 : index
    %c0_3 = arith.constant 0 : index
    %c0_4 = arith.constant 0 : index
    %2 = vector.load %arg3[%c0_2, %c0_3, %c0_4] : memref<4x2x32xf32, #tpu.memory_space<vmem>>, vector<1x1x8xf32>
    %3 = vector.shape_cast %2 : vector<1x1x8xf32> to vector<1x8xf32>
    %c0_5 = arith.constant 0 : index
    %c1 = arith.constant 1 : index
    %c0_6 = arith.constant 0 : index
    %4 = vector.load %arg3[%c0_5, %c1, %c0_6] : memref<4x2x32xf32, #tpu.memory_space<vmem>>, vector<1x1x8xf32>
    %5 = vector.shape_cast %4 : vector<1x1x8xf32> to vector<1x8xf32>
    %cst = arith.constant dense<0.000000e+00> : vector<8xf32>
    %6 = vector.multi_reduction <add>, %1, %cst [0] : vector<16x8xf32> to vector<8xf32>
    %7 = vector.shape_cast %6 : vector<8xf32> to vector<1x8xf32>
    %cst_7 = arith.constant 1.600000e+01 : f32
    %8 = vector.broadcast %cst_7 : f32 to vector<1x8xf32>
    %9 = arith.divf %7, %8 : vector<1x8xf32>
    %10 = vector.broadcast %9 : vector<1x8xf32> to vector<16x8xf32>
    %11 = arith.subf %1, %10 : vector<16x8xf32>
    %12 = arith.mulf %11, %11 : vector<16x8xf32>
    %cst_8 = arith.constant dense<0.000000e+00> : vector<8xf32>
    %13 = vector.multi_reduction <add>, %12, %cst_8 [0] : vector<16x8xf32> to vector<8xf32>
    %14 = vector.shape_cast %13 : vector<8xf32> to vector<1x8xf32>
    %cst_9 = arith.constant 1.600000e+01 : f32
    %15 = vector.broadcast %cst_9 : f32 to vector<1x8xf32>
    %16 = arith.divf %14, %15 : vector<1x8xf32>
    %cst_10 = arith.constant 9.99999997E-7 : f32
    %17 = vector.broadcast %cst_10 : f32 to vector<1x8xf32>
    %18 = arith.addf %16, %17 : vector<1x8xf32>
    %19 = math.rsqrt %18 : vector<1x8xf32>
    %20 = arith.mulf %3, %19 : vector<1x8xf32>
    %21 = arith.mulf %9, %20 : vector<1x8xf32>
    %22 = arith.subf %5, %21 : vector<1x8xf32>
    %23 = vector.broadcast %20 : vector<1x8xf32> to vector<16x8xf32>
    %24 = arith.mulf %1, %23 : vector<16x8xf32>
    %25 = vector.broadcast %22 : vector<1x8xf32> to vector<16x8xf32>
    %26 = arith.addf %24, %25 : vector<16x8xf32>
    %c0_11 = arith.constant 0 : index
    %c0_12 = arith.constant 0 : index
    %c0_13 = arith.constant 0 : index
    %27 = vector.load %arg2[%c0_11, %c0_12, %c0_13] : memref<3x32x32xf32, #tpu.memory_space<vmem>>, vector<1x8x32xf32>
    %28 = vector.shape_cast %27 : vector<1x8x32xf32> to vector<8x32xf32>
    %cst_14 = arith.constant dense<0.000000e+00> : vector<16x32xf32>
    %29 = tpu.matmul %26, %28, %cst_14 {dimension_numbers = #tpu.dot_dimension_numbers<[1], [0], [0], [1], [0, 0, 1, 1], [], []>} : vector<16x8xf32>, vector<8x32xf32>, vector<16x32xf32> -> vector<16x32xf32>
    %c1_15 = arith.constant 1 : index
    %c0_16 = arith.constant 0 : index
    %c0_17 = arith.constant 0 : index
    %30 = vector.load %arg3[%c1_15, %c0_16, %c0_17] : memref<4x2x32xf32, #tpu.memory_space<vmem>>, vector<1x1x32xf32>
    %31 = vector.shape_cast %30 : vector<1x1x32xf32> to vector<1x32xf32>
    %c1_18 = arith.constant 1 : index
    %c1_19 = arith.constant 1 : index
    %c0_20 = arith.constant 0 : index
    %32 = vector.load %arg3[%c1_18, %c1_19, %c0_20] : memref<4x2x32xf32, #tpu.memory_space<vmem>>, vector<1x1x32xf32>
    %33 = vector.shape_cast %32 : vector<1x1x32xf32> to vector<1x32xf32>
    %cst_21 = arith.constant dense<0.000000e+00> : vector<32xf32>
    %34 = vector.multi_reduction <add>, %29, %cst_21 [0] : vector<16x32xf32> to vector<32xf32>
    %35 = vector.shape_cast %34 : vector<32xf32> to vector<1x32xf32>
    %cst_22 = arith.constant 1.600000e+01 : f32
    %36 = vector.broadcast %cst_22 : f32 to vector<1x32xf32>
    %37 = arith.divf %35, %36 : vector<1x32xf32>
    %38 = vector.broadcast %37 : vector<1x32xf32> to vector<16x32xf32>
    %39 = arith.subf %29, %38 : vector<16x32xf32>
    %40 = arith.mulf %39, %39 : vector<16x32xf32>
    %cst_23 = arith.constant dense<0.000000e+00> : vector<32xf32>
    %41 = vector.multi_reduction <add>, %40, %cst_23 [0] : vector<16x32xf32> to vector<32xf32>
    %42 = vector.shape_cast %41 : vector<32xf32> to vector<1x32xf32>
    %cst_24 = arith.constant 1.600000e+01 : f32
    %43 = vector.broadcast %cst_24 : f32 to vector<1x32xf32>
    %44 = arith.divf %42, %43 : vector<1x32xf32>
    %cst_25 = arith.constant 9.99999997E-7 : f32
    %45 = vector.broadcast %cst_25 : f32 to vector<1x32xf32>
    %46 = arith.addf %44, %45 : vector<1x32xf32>
    %47 = math.rsqrt %46 : vector<1x32xf32>
    %48 = arith.mulf %31, %47 : vector<1x32xf32>
    %49 = arith.mulf %37, %48 : vector<1x32xf32>
    %50 = arith.subf %33, %49 : vector<1x32xf32>
    %51 = vector.broadcast %48 : vector<1x32xf32> to vector<16x32xf32>
    %52 = arith.mulf %29, %51 : vector<16x32xf32>
    %53 = vector.broadcast %50 : vector<1x32xf32> to vector<16x32xf32>
    %54 = arith.addf %52, %53 : vector<16x32xf32>
    %cst_26 = arith.constant 0.000000e+00 : f32
    %55 = vector.broadcast %cst_26 : f32 to vector<16x32xf32>
    %56 = arith.maximumf %54, %55 : vector<16x32xf32>
    %c1_27 = arith.constant 1 : index
    %c0_28 = arith.constant 0 : index
    %c0_29 = arith.constant 0 : index
    %57 = vector.load %arg2[%c1_27, %c0_28, %c0_29] : memref<3x32x32xf32, #tpu.memory_space<vmem>>, vector<1x32x16xf32>
    %58 = vector.shape_cast %57 : vector<1x32x16xf32> to vector<32x16xf32>
    %cst_30 = arith.constant dense<0.000000e+00> : vector<16x16xf32>
    %59 = tpu.matmul %56, %58, %cst_30 {dimension_numbers = #tpu.dot_dimension_numbers<[1], [0], [0], [1], [0, 0, 1, 1], [], []>} : vector<16x32xf32>, vector<32x16xf32>, vector<16x16xf32> -> vector<16x16xf32>
    %c2 = arith.constant 2 : index
    %c0_31 = arith.constant 0 : index
    %c0_32 = arith.constant 0 : index
    %60 = vector.load %arg3[%c2, %c0_31, %c0_32] : memref<4x2x32xf32, #tpu.memory_space<vmem>>, vector<1x1x16xf32>
    %61 = vector.shape_cast %60 : vector<1x1x16xf32> to vector<1x16xf32>
    %c2_33 = arith.constant 2 : index
    %c1_34 = arith.constant 1 : index
    %c0_35 = arith.constant 0 : index
    %62 = vector.load %arg3[%c2_33, %c1_34, %c0_35] : memref<4x2x32xf32, #tpu.memory_space<vmem>>, vector<1x1x16xf32>
    %63 = vector.shape_cast %62 : vector<1x1x16xf32> to vector<1x16xf32>
    %cst_36 = arith.constant dense<0.000000e+00> : vector<16xf32>
    %64 = vector.multi_reduction <add>, %59, %cst_36 [0] : vector<16x16xf32> to vector<16xf32>
    %65 = vector.shape_cast %64 : vector<16xf32> to vector<1x16xf32>
    %cst_37 = arith.constant 1.600000e+01 : f32
    %66 = vector.broadcast %cst_37 : f32 to vector<1x16xf32>
    %67 = arith.divf %65, %66 : vector<1x16xf32>
    %68 = vector.broadcast %67 : vector<1x16xf32> to vector<16x16xf32>
    %69 = arith.subf %59, %68 : vector<16x16xf32>
    %70 = arith.mulf %69, %69 : vector<16x16xf32>
    %cst_38 = arith.constant dense<0.000000e+00> : vector<16xf32>
    %71 = vector.multi_reduction <add>, %70, %cst_38 [0] : vector<16x16xf32> to vector<16xf32>
    %72 = vector.shape_cast %71 : vector<16xf32> to vector<1x16xf32>
    %cst_39 = arith.constant 1.600000e+01 : f32
    %73 = vector.broadcast %cst_39 : f32 to vector<1x16xf32>
    %74 = arith.divf %72, %73 : vector<1x16xf32>
    %cst_40 = arith.constant 9.99999997E-7 : f32
    %75 = vector.broadcast %cst_40 : f32 to vector<1x16xf32>
    %76 = arith.addf %74, %75 : vector<1x16xf32>
    %77 = math.rsqrt %76 : vector<1x16xf32>
    %78 = arith.mulf %61, %77 : vector<1x16xf32>
    %79 = arith.mulf %67, %78 : vector<1x16xf32>
    %80 = arith.subf %63, %79 : vector<1x16xf32>
    %81 = vector.broadcast %78 : vector<1x16xf32> to vector<16x16xf32>
    %82 = arith.mulf %59, %81 : vector<16x16xf32>
    %83 = vector.broadcast %80 : vector<1x16xf32> to vector<16x16xf32>
    %84 = arith.addf %82, %83 : vector<16x16xf32>
    %cst_41 = arith.constant 0.000000e+00 : f32
    %85 = vector.broadcast %cst_41 : f32 to vector<16x16xf32>
    %86 = arith.maximumf %84, %85 : vector<16x16xf32>
    %c2_42 = arith.constant 2 : index
    %c0_43 = arith.constant 0 : index
    %c0_44 = arith.constant 0 : index
    %87 = vector.load %arg2[%c2_42, %c0_43, %c0_44] : memref<3x32x32xf32, #tpu.memory_space<vmem>>, vector<1x16x8xf32>
    %88 = vector.shape_cast %87 : vector<1x16x8xf32> to vector<16x8xf32>
    %cst_45 = arith.constant dense<0.000000e+00> : vector<16x8xf32>
    %89 = tpu.matmul %86, %88, %cst_45 {dimension_numbers = #tpu.dot_dimension_numbers<[1], [0], [0], [1], [0, 0, 1, 1], [], []>} : vector<16x16xf32>, vector<16x8xf32>, vector<16x8xf32> -> vector<16x8xf32>
    %c3 = arith.constant 3 : index
    %c0_46 = arith.constant 0 : index
    %c0_47 = arith.constant 0 : index
    %90 = vector.load %arg3[%c3, %c0_46, %c0_47] : memref<4x2x32xf32, #tpu.memory_space<vmem>>, vector<1x1x8xf32>
    %91 = vector.shape_cast %90 : vector<1x1x8xf32> to vector<1x8xf32>
    %c3_48 = arith.constant 3 : index
    %c1_49 = arith.constant 1 : index
    %c0_50 = arith.constant 0 : index
    %92 = vector.load %arg3[%c3_48, %c1_49, %c0_50] : memref<4x2x32xf32, #tpu.memory_space<vmem>>, vector<1x1x8xf32>
    %93 = vector.shape_cast %92 : vector<1x1x8xf32> to vector<1x8xf32>
    %cst_51 = arith.constant dense<0.000000e+00> : vector<8xf32>
    %94 = vector.multi_reduction <add>, %89, %cst_51 [0] : vector<16x8xf32> to vector<8xf32>
    %95 = vector.shape_cast %94 : vector<8xf32> to vector<1x8xf32>
    %cst_52 = arith.constant 1.600000e+01 : f32
    %96 = vector.broadcast %cst_52 : f32 to vector<1x8xf32>
    %97 = arith.divf %95, %96 : vector<1x8xf32>
    %98 = vector.broadcast %97 : vector<1x8xf32> to vector<16x8xf32>
    %99 = arith.subf %89, %98 : vector<16x8xf32>
    %100 = arith.mulf %99, %99 : vector<16x8xf32>
    %cst_53 = arith.constant dense<0.000000e+00> : vector<8xf32>
    %101 = vector.multi_reduction <add>, %100, %cst_53 [0] : vector<16x8xf32> to vector<8xf32>
    %102 = vector.shape_cast %101 : vector<8xf32> to vector<1x8xf32>
    %cst_54 = arith.constant 1.600000e+01 : f32
    %103 = vector.broadcast %cst_54 : f32 to vector<1x8xf32>
    %104 = arith.divf %102, %103 : vector<1x8xf32>
    %cst_55 = arith.constant 9.99999997E-7 : f32
    %105 = vector.broadcast %cst_55 : f32 to vector<1x8xf32>
    %106 = arith.addf %104, %105 : vector<1x8xf32>
    %107 = math.rsqrt %106 : vector<1x8xf32>
    %108 = arith.mulf %91, %107 : vector<1x8xf32>
    %109 = arith.mulf %97, %108 : vector<1x8xf32>
    %110 = arith.subf %93, %109 : vector<1x8xf32>
    %111 = vector.broadcast %108 : vector<1x8xf32> to vector<16x8xf32>
    %112 = arith.mulf %89, %111 : vector<16x8xf32>
    %113 = vector.broadcast %110 : vector<1x8xf32> to vector<16x8xf32>
    %114 = arith.addf %112, %113 : vector<16x8xf32>
    %c0_56 = arith.constant 0 : index
    %c0_57 = arith.constant 0 : index
    %c0_58 = arith.constant 0 : index
    %115 = vector.load %arg4[%c0_56, %c0_57, %c0_58] : memref<1x16x8xf32, #tpu.memory_space<vmem>>, vector<1x16x8xf32>
    %116 = vector.shape_cast %115 : vector<1x16x8xf32> to vector<16x8xf32>
    %117 = vector.shape_cast %114 : vector<16x8xf32> to vector<1x16x8xf32>
    tpu.vector_store %arg4[%c0_56, %c0_57, %c0_58], %117 {strides = array<i32>} : memref<1x16x8xf32, #tpu.memory_space<vmem>>, vector<1x16x8xf32>,
    return
  }
  func.func @transform_0(%arg0: i32) -> (i32, i32, i32) {
    %c0_i32 = arith.constant 0 : i32
    %c0_i32_0 = arith.constant 0 : i32
    %c0_i32_1 = arith.constant 0 : i32
    return %arg0, %c0_i32, %c0_i32_0 : i32, i32, i32
  }
  func.func @transform_1(%arg0: i32) -> (i32, i32, i32) {
    %c0_i32 = arith.constant 0 : i32
    %c0_i32_0 = arith.constant 0 : i32
    %c0_i32_1 = arith.constant 0 : i32
    %c0_i32_2 = arith.constant 0 : i32
    return %c0_i32, %c0_i32_0, %c0_i32_1 : i32, i32, i32
  }
  func.func @transform_2(%arg0: i32) -> (i32, i32, i32) {
    %c0_i32 = arith.constant 0 : i32
    %c0_i32_0 = arith.constant 0 : i32
    %c0_i32_1 = arith.constant 0 : i32
    %c0_i32_2 = arith.constant 0 : i32
    return %c0_i32, %c0_i32_0, %c0_i32_1 : i32, i32, i32
  }
  func.func @transform_3(%arg0: i32) -> (i32, i32, i32) {
    %c0_i32 = arith.constant 0 : i32
    %c0_i32_0 = arith.constant 0 : i32
    %c0_i32_1 = arith.constant 0 : i32
    return %arg0, %c0_i32, %c0_i32_0 : i32, i32, i32
  }
}

</mosaic_0001>

<llo_original>
// kernel: tpu_custom_call.1
$region0: #{tpu_custom_call.1}
  #allocation0 [shape = 'u32[]', space=smem, size = 0x4, offset = 0x4, fixed_abs, tag = 'smem constant byte address 0x4 - core index']
  #allocation1 [shape = 'u32[144,128]{1,0:T(1,128)}', space=vmem, size = 0x12000, scoped, tag = 'internal scratch']
  %s0 = inlined_call_operand.vmem [shape: f32[4,16,8], index: 0, kind: input, shape index: {}]
  %s1 = inlined_call_operand.vmem [shape: f32[3,32,32], index: 1, kind: input, shape index: {}]
  %s2 = inlined_call_operand.hbm [shape: f32[4,2,32], index: 2, kind: input, shape index: {}]
  %s3 = inlined_call_operand.vmem [shape: f32[4,16,8], index: 3, kind: output, shape index: {}]
  %s4 = sld [smem:[#allocation0]]
  $region49: #{tpu_custom_call.1} parent=0
    _
  %s6 = ssub.s32 1, %s4
  %s7 = scalar_select 0, %s6, %s4
  $region1: #{tpu_custom_call.1} parent=0
    #allocation2 [shape = 'u8[4096]{0}', space=vmem, size = 0x1000, scoped, tag = 'input window, operand 2, single buffered']
    #allocation3 [shape = 's32[2]{0}', space=sflag, size = 0x8, scoped, tag = 'scoped memory for tpu_custom_call.1']
    %8 = vsyncpa [#allocation3], 0
    loop: start=0, step=1, limit=6
    $region2: #{tpu_custom_call.1} parent=1 // loop_pre_header
      _
    $region3: #{tpu_custom_call.1} parent=1 // loop_header
      %s10 = sphi 0, %s14
      %p11 = scmp.ge.s32.totalorder %s10, 6
      %s20 = sphi 0, %s22
      %s23 = sphi 0, %s20
      %s24 = sphi 0, %s23
      %s40 = sphi 0, %s24
      %s44 = sphi 0, %s44
      %s46 = sphi 0, %s44
      %s47 = sphi 0, %s46
      %s61 = sphi 0, %s47
      %s65 = sphi 0, %s65
      %s67 = sphi 0, %s65
      %s68 = sphi 0, %s67
      %s82 = sphi 0, %s68
      %s88 = sphi 0, %s90
      %s91 = sphi 0, %s88
      %s92 = sphi 0, %s91
      %s108 = sphi 0, %s92
    $region4: #{tpu_custom_call.1} parent=1 // loop_header_branch
      %13 = sbr.rel (%p11) target = $region8
    $region5: #{tpu_custom_call.1} parent=1 // loop_body
      %s15 = ssub.s32 %s10, 1
      %s16 = ssub.s32 %s10, 2
      %s17 = sadd.s32 %s10, 1
      %s18 = ssub.s32 %s10, %s17
      %p19 = scmp.eq.s32.totalorder %s18, 0
      %s21 = sadd.s32 %s20, 1
      %s22 = scalar_select %p19, %s20, %s21
      %p25 = pneg %p19
      %p26 = scmp.eq.s32.totalorder %s10, 3
      %p27 = por %p25, %p26
      %p28 = scmp.ne.s32.totalorder %s20, %s23
      %p29 = scmp.eq.s32.totalorder %s10, 0
      %p30 = por %p28, %p29
      %p31 = scmp.ne.s32.totalorder %s20, %s23
      %p32 = scmp.eq.s32.totalorder %s15, 3
      %p33 = por %p31, %p32
      %p34 = scmp.ne.s32.totalorder %s23, %s24
      %p35 = scmp.eq.s32.totalorder %s15, 0
      %p36 = por %p34, %p35
      %p37 = scmp.ne.s32.totalorder %s23, %s24
      %p38 = scmp.eq.s32.totalorder %s16, 3
      %p39 = por %p37, %p38
      %p41 = scmp.ne.s32.totalorder %s24, %s40
      %p42 = scmp.eq.s32.totalorder %s16, 0
      %p43 = por %p41, %p42
      %s45 = sadd.s32 %s44, 1
      %p48 = scmp.eq.s32.totalorder %s10, 3
      %p49 = scmp.ne.s32.totalorder %s44, %s46
      %p50 = scmp.eq.s32.totalorder %s10, 0
      %p51 = por %p49, %p50
      %p52 = scmp.ne.s32.totalorder %s44, %s46
      %p53 = scmp.eq.s32.totalorder %s15, 3
      %p54 = por %p52, %p53
      %p55 = scmp.ne.s32.totalorder %s46, %s47
      %p56 = scmp.eq.s32.totalorder %s15, 0
      %p57 = por %p55, %p56
      %p58 = scmp.ne.s32.totalorder %s46, %s47
      %p59 = scmp.eq.s32.totalorder %s16, 3
      %p60 = por %p58, %p59
      %p62 = scmp.ne.s32.totalorder %s47, %s61
      %p63 = scmp.eq.s32.totalorder %s16, 0
      %p64 = por %p62, %p63
      %s66 = sadd.s32 %s65, 1
      %p69 = scmp.eq.s32.totalorder %s10, 3
      %p70 = scmp.ne.s32.totalorder %s65, %s67
      %p71 = scmp.eq.s32.totalorder %s10, 0
      %p72 = por %p70, %p71
      %p73 = scmp.ne.s32.totalorder %s65, %s67
      %p74 = scmp.eq.s32.totalorder %s15, 3
      %p75 = por %p73, %p74
      %p76 = scmp.ne.s32.totalorder %s67, %s68
      %p77 = scmp.eq.s32.totalorder %s15, 0
      %p78 = por %p76, %p77
      %p79 = scmp.ne.s32.totalorder %s67, %s68
      %p80 = scmp.eq.s32.totalorder %s16, 3
      %p81 = por %p79, %p80
      %p83 = scmp.ne.s32.totalorder %s68, %s82
      %p84 = scmp.eq.s32.totalorder %s16, 0
      %p85 = por %p83, %p84
      %s86 = ssub.s32 %s10, %s17
      %p87 = scmp.eq.s32.totalorder %s86, 0
      %s89 = sadd.s32 %s88, 1
      %s90 = scalar_select %p87, %s88, %s89
      %p93 = pneg %p87
      %p94 = scmp.eq.s32.totalorder %s10, 3
      %p95 = por %p93, %p94
      %p96 = scmp.ne.s32.totalorder %s88, %s91
      %p97 = scmp.eq.s32.totalorder %s10, 0
      %p98 = por %p96, %p97
      %p99 = scmp.ne.s32.totalorder %s88, %s91
      %p100 = scmp.eq.s32.totalorder %s15, 3
      %p101 = por %p99, %p100
      %p102 = scmp.ne.s32.totalorder %s91, %s92
      %p103 = scmp.eq.s32.totalorder %s15, 0
      %p104 = por %p102, %p103
      %p105 = scmp.ne.s32.totalorder %s91, %s92
      %p106 = scmp.eq.s32.totalorder %s16, 3
      %p107 = por %p105, %p106
      %p109 = scmp.ne.s32.totalorder %s92, %s108
      %p110 = scmp.eq.s32.totalorder %s16, 0
      %p111 = por %p109, %p110
      %p112 = scmp.le.s32.totalorder 1, %s10
      %p113 = scmp.lt.s32.totalorder %s10, 5
      %p114 = pnand %p112, %p113
      %p115 = pneg %p114
      // Predicated region
      $region9: #{tpu_custom_call.1} parent=5 // pred_check
        _
      $region10: #{tpu_custom_call.1} parent=5 // pred_check_branch
        %117 = sbr.rel (%p114) target = $region12
      $region11: #{tpu_custom_call.1} parent=5 // pred_region
        %s118 = ssub.s32 %s10, 1
        // Predicated region
        $region13: #{tpu_custom_call.1} parent=11 // pred_check
          %p119 = pneg %p57
        $region14: #{tpu_custom_call.1} parent=11 // pred_check_branch
          %121 = sbr.rel (%p119) target = $region16
        $region15: #{tpu_custom_call.1} parent=11 // pred_region
          _
        $region16: #{tpu_custom_call.1} parent=11 // pred_fallthru
          _
        // Predicated region
        $region17: #{tpu_custom_call.1} parent=11 // pred_check
          %p122 = pneg %p78
        $region18: #{tpu_custom_call.1} parent=11 // pred_check_branch
          %124 = sbr.rel (%p122) target = $region20
        $region19: #{tpu_custom_call.1} parent=11 // pred_region
          %s126 = ssub.s32 128, 128
          %127 = vsyncadd [#allocation3], %s126
          %s128 = sshll.u32 [#allocation2], 4
          %s129 = int_to_ptr.vmem [resolvable:$true] %s128
          %134 = dma.hbm_to_vmem [thread:$0]  %s2, 128, %s129, [#allocation3], 32, 32, 2
        $region20: #{tpu_custom_call.1} parent=11 // pred_fallthru
          _
      $region12: #{tpu_custom_call.1} parent=5 // pred_fallthru
        _
      %p135 = scmp.lt.s32.totalorder %s10, 4
      // Predicated region
      $region21: #{tpu_custom_call.1} parent=5 // pred_check
        %p136 = pneg %p135
      $region22: #{tpu_custom_call.1} parent=5 // pred_check_branch
        %138 = sbr.rel (%p136) target = $region24
      $region23: #{tpu_custom_call.1} parent=5 // pred_region
        // Predicated region
        $region25: #{tpu_custom_call.1} parent=23 // pred_check
          %p139 = pneg %p30
        $region26: #{tpu_custom_call.1} parent=23 // pred_check_branch
          %141 = sbr.rel (%p139) target = $region28
        $region27: #{tpu_custom_call.1} parent=23 // pred_region
          %p142 = scmp.lt.s32.totalorder %s10, 3
          %s143 = scalar_select %p142, %s10, 3
          %s144 = smul.addr %s143, 2
          %s145 = smul.addr %s144, 8
          %s146 = scalar_lea.vmem %s0, %s145
        $region28: #{tpu_custom_call.1} parent=23 // pred_fallthru
          _
      $region24: #{tpu_custom_call.1} parent=5 // pred_fallthru
        _
      %p147 = scmp.le.s32.totalorder 1, %s10
      %p148 = scmp.lt.s32.totalorder %s10, 5
      %p149 = pnand %p147, %p148
      %p150 = pneg %p149
      // Predicated region
      $region29: #{tpu_custom_call.1} parent=5 // pred_check
        _
      $region30: #{tpu_custom_call.1} parent=5 // pred_check_branch
        %152 = sbr.rel (%p149) target = $region32
      $region31: #{tpu_custom_call.1} parent=5 // pred_region
        %s153 = ssub.s32 %s10, 1
        // Predicated region
        $region33: #{tpu_custom_call.1} parent=31 // pred_check
          %p154 = pneg %p78
        $region34: #{tpu_custom_call.1} parent=31 // pred_check_branch
          %156 = sbr.rel (%p154) target = $region36
        $region35: #{tpu_custom_call.1} parent=31 // pred_region
          %157 = dma.done [#allocation3], 128
        $region36: #{tpu_custom_call.1} parent=31 // pred_fallthru
          _
        %p158 = scmp.lt.s32.totalorder %s15, 3
        %s159 = scalar_select %p158, %s15, 3
        %s160 = smul.addr %s159, 2
        %s161 = smul.addr %s160, 8
        %s162 = scalar_lea.vmem %s0, %s161
        %p163 = pneg %p36
        %p164 = pneg %p33
        %p165 = pneg %p57
        %p166 = pneg %p54
        %p167 = pneg %p78
        %p168 = pneg %p75
        %p169 = pneg %p104
        %p170 = pneg %p101
        %p171 = scmp.lt.s32.totalorder %s15, 3
        %s172 = scalar_select %p171, %s15, 3
        %s173 = smul.addr %s172, 2
        %s174 = smul.addr %s173, 8
        %s175 = scalar_lea.vmem %s3, %s174
        %p176 = scmp.lt.s32.totalorder %s15, 3
        %s177 = scalar_select %p176, %s15, 3
        %s178 = smul.addr %s177, 2
        %s179 = smul.addr %s178, 8
        %s180 = scalar_lea.vmem %s0, %s179
        %p181 = scmp.lt.s32.totalorder %s15, 3
        %s182 = scalar_select %p181, %s15, 3
        %s183 = smul.addr %s182, 2
        %s184 = smul.addr %s183, 8
        %s185 = scalar_lea.vmem %s3, %s184
        %v186 = vld [vmem:[%s180] sm:$0xff]
        %v187 = vld [vmem:[%s180 + $0x8] sm:$0xff]
        %v188 = vld [vmem:[#allocation2] sm:$0x1]
        %v189 = vld [vmem:[#allocation2 + $0x1] sm:$0x1]
        %vm190 = vcmask 64512
        %v191 = vsel %vm190, %v186, 0.0
        %v192 = vsel %vm190, %v187, 0.0
        %v193 = vadd.f32 %v191, %v192
        %v194 = vrot.slane %v193, 4
        %v195 = vadd.f32 %v193, %v194
        %v196 = vrot.slane %v195, 2
        %v197 = vadd.f32 %v195, %v196
        %v198 = vrot.slane %v197, 1
        %v199 = vadd.f32 %v197, %v198
        %v200 = vrcp.pop 16.0
        %v201 = vmul.f32 %v199, %v200
        %v202 = vsub.f32 %v186, %v201
        %v203 = vsub.f32 %v187, %v201
        %v204 = vmul.f32 %v202, %v202
        %v205 = vmul.f32 %v203, %v203
        %v206 = vsel %vm190, %v204, 0.0
        %v207 = vsel %vm190, %v205, 0.0
        %v208 = vadd.f32 %v206, %v207
        %v209 = vrot.slane %v208, 4
        %v210 = vadd.f32 %v208, %v209
        %v211 = vrot.slane %v210, 2
        %v212 = vadd.f32 %v210, %v211
        %v213 = vrot.slane %v212, 1
        %v214 = vadd.f32 %v212, %v213
        %v215 = vmul.f32 %v214, %v200
        %v216 = vadd.f32 %v215, 1e-06
        %v217 = vrsqrt.pop %v216
        %v218 = vmul.f32 %v188, %v217
        %v219 = vmul.f32 %v201, %v218
        %v220 = vsub.f32 %v189, %v219
        %v221 = vlaneseq
        %v222 = vshrl.u32 %v221, 7
        %v223 = vsub.s32 0, %v222
        %v224 = vrot.slane %v218, %v223
        %v225 = vmul.f32 %v186, %v224
        %v226 = vmul.f32 %v187, %v224
        %v227 = vlaneseq
        %v228 = vshrl.u32 %v227, 7
        %v229 = vsub.s32 0, %v228
        %v230 = vrot.slane %v220, %v229
        %v231 = vadd.f32 %v225, %v230
        %v232 = vadd.f32 %v226, %v230
        %v233 = vld [vmem:[%s1] sm:$0xff]
        %v235 = vsel %vm190, %v231, 0
        %v238 = vsel %vm190, %v232, 0
        %240 = vmatprep.subr.mxu0 0.0
        %241 = vmatpush1.msra.mxu0 %v233
        %242 = vmatprep.subr.mxu0 0.0
        %243 = vmatpush1.msra.mxu0 0.0
        %244 = vmatprep.subr.mxu0 0.0
        %245 = vmatpush1.msra.mxu0 0.0
        %246 = vmatprep.subr.mxu0 0.0
        %247 = vmatpush1.msra.mxu0 0.0
        %248 = vmatprep.subr.mxu0 0.0
        %249 = vmatpush1.msra.mxu0 0.0
        %250 = vmatprep.subr.mxu0 0.0
        %251 = vmatpush1.msra.mxu0 0.0
        %252 = vmatprep.subr.mxu0 0.0
        %253 = vmatpush1.msra.mxu0 0.0
        %254 = vmatprep.subr.mxu0 0.0
        %255 = vmatpush1.msra.mxu0 0.0
        %256 = vmatprep.subr.mxu0 0.0
        %257 = vmatpush1.msra.mxu0 0.0
        %258 = vmatprep.subr.mxu0 0.0
        %259 = vmatpush1.msra.mxu0 0.0
        %260 = vmatprep.subr.mxu0 0.0
        %261 = vmatpush1.msra.mxu0 0.0
        %262 = vmatprep.subr.mxu0 0.0
        %263 = vmatpush1.msra.mxu0 0.0
        %264 = vmatprep.subr.mxu0 0.0
        %265 = vmatpush1.msra.mxu0 0.0
        %266 = vmatprep.subr.mxu0 0.0
        %267 = vmatpush1.msra.mxu0 0.0
        %268 = vmatprep.subr.mxu0 0.0
        %269 = vmatpush1.msra.mxu0 0.0
        %270 = vmatprep.subr.mxu0 0.0
        %271 = vmatpush1.msra.mxu0 0.0
        %272 = vmatprep.subr.mxu0 0.0
        %273 = vmatpush1.msra.mxu0 0.0
        %274 = vmatprep.subr.mxu0 0.0
        %275 = vmatpush1.msra.mxu0 0.0
        %276 = vmatprep.subr.mxu0 0.0
        %277 = vmatpush1.msra.mxu0 0.0
        %278 = vmatprep.subr.mxu0 0.0
        %279 = vmatpush1.msra.mxu0 0.0
        %280 = vmatprep.subr.mxu0 0.0
        %281 = vmatpush1.msra.mxu0 0.0
        %282 = vmatprep.subr.mxu0 0.0
        %283 = vmatpush1.msra.mxu0 0.0
        %284 = vmatprep.subr.mxu0 0.0
        %285 = vmatpush1.msra.mxu0 0.0
        %286 = vmatprep.subr.mxu0 0.0
        %287 = vmatpush1.msra.mxu0 0.0
        %288 = vmatprep.subr.mxu0 0.0
        %289 = vmatpush1.msra.mxu0 0.0
        %290 = vmatprep.subr.mxu0 0.0
        %291 = vmatpush1.msra.mxu0 0.0
        %292 = vmatprep.subr.mxu0 0.0
        %293 = vmatpush1.msra.mxu0 0.0
        %294 = vmatprep.subr.mxu0 0.0
        %295 = vmatpush1.msra.mxu0 0.0
        %296 = vmatprep.subr.mxu0 0.0
        %297 = vmatpush1.msra.mxu0 0.0
        %298 = vmatprep.subr.mxu0 0.0
        %299 = vmatpush1.msra.mxu0 0.0
        %300 = vmatprep.subr.mxu0 0.0
        %301 = vmatpush1.msra.mxu0 0.0
        %302 = vmatprep.subr.mxu0 0.0
        %303 = vmatpush1.msra.mxu0 0.0
        %304 = vmatprep.mubr.f32.mxu0 0.0
        %305 = vmatmul.mubr.f32.gmra.mrb[0].mxu0 %v235
        %v306 = vpop.f32.mrb[0].mxu0
        %v307 = vadd.f32 0.0, %v306
        %v308 = vpop.f32.mrb[0].mxu0
        %309 = vmatprep.mubr.f32.mxu0 0.0
        %310 = vmatmul.mubr.f32.gmra.mrb[0].mxu0 %v238
        %v311 = vpop.f32.mrb[0].mxu0
        %v312 = vadd.f32 0.0, %v311
        %v313 = vpop.f32.mrb[0].mxu0
        %314 = vdwg.mxu0
        %s315 = scalar_lea.vmem [#allocation2], 2
        %v316 = vld [vmem:[%s315] sm:$0x1]
        %v317 = vld [vmem:[%s315 + $0x1] sm:$0x1]
        %vm318 = vcmask 261120
        %v319 = vsel %vm318, %v307, 0.0
        %v320 = vsel %vm318, %v312, 0.0
        %v321 = vadd.f32 %v319, %v320
        %v322 = vrot.slane %v321, 4
        %v323 = vadd.f32 %v321, %v322
        %v324 = vrot.slane %v323, 2
        %v325 = vadd.f32 %v323, %v324
        %v326 = vrot.slane %v325, 1
        %v327 = vadd.f32 %v325, %v326
        %v328 = vmul.f32 %v327, %v200
        %v329 = vsub.f32 %v307, %v328
        %v330 = vsub.f32 %v312, %v328
        %v331 = vmul.f32 %v329, %v329
        %v332 = vmul.f32 %v330, %v330
        %v333 = vsel %vm318, %v331, 0.0
        %v334 = vsel %vm318, %v332, 0.0
        %v335 = vadd.f32 %v333, %v334
        %v336 = vrot.slane %v335, 4
        %v337 = vadd.f32 %v335, %v336
        %v338 = vrot.slane %v337, 2
        %v339 = vadd.f32 %v337, %v338
        %v340 = vrot.slane %v339, 1
        %v341 = vadd.f32 %v339, %v340
        %v342 = vmul.f32 %v341, %v200
        %v343 = vadd.f32 %v342, 1e-06
        %v344 = vrsqrt.pop %v343
        %v345 = vmul.f32 %v316, %v344
        %v346 = vmul.f32 %v328, %v345
        %v347 = vsub.f32 %v317, %v346
        %v348 = vlaneseq
        %v349 = vshrl.u32 %v348, 7
        %v350 = vsub.s32 0, %v349
        %v351 = vrot.slane %v345, %v350
        %v352 = vmul.f32 %v307, %v351
        %v353 = vmul.f32 %v312, %v351
        %v354 = vlaneseq
        %v355 = vshrl.u32 %v354, 7
        %v356 = vsub.s32 0, %v355
        %v357 = vrot.slane %v347, %v356
        %v358 = vadd.f32 %v352, %v357
        %v359 = vadd.f32 %v353, %v357
        %v360 = vmax.f32 %v358, 0.0
        %v361 = vmax.f32 %v359, 0.0
        %s362 = scalar_lea.vmem %s1, 32
        %v363 = vld [vmem:[%s362] sm:$0xff]
        %v364 = vld [vmem:[%s362 + $0x8] sm:$0xff]
        %v365 = vld [vmem:[%s362 + $0x10] sm:$0xff]
        %v366 = vld [vmem:[%s362 + $0x18] sm:$0xff]
        %v368 = vsel %vm318, %v360, 0
        %v371 = vsel %vm318, %v361, 0
        %373 = vmatprep.subr.mxu0 0.0
        %374 = vmatpush1.msra.mxu0 %v363
        %375 = vmatprep.subr.mxu0 0.0
        %376 = vmatpush1.msra.mxu0 %v364
        %377 = vmatprep.subr.mxu0 0.0
        %378 = vmatpush1.msra.mxu0 %v365
        %379 = vmatprep.subr.mxu0 0.0
        %380 = vmatpush1.msra.mxu0 %v366
        %381 = vmatprep.subr.mxu0 0.0
        %382 = vmatpush1.msra.mxu0 0.0
        %383 = vmatprep.subr.mxu0 0.0
        %384 = vmatpush1.msra.mxu0 0.0
        %385 = vmatprep.subr.mxu0 0.0
        %386 = vmatpush1.msra.mxu0 0.0
        %387 = vmatprep.subr.mxu0 0.0
        %388 = vmatpush1.msra.mxu0 0.0
        %389 = vmatprep.subr.mxu0 0.0
        %390 = vmatpush1.msra.mxu0 0.0
        %391 = vmatprep.subr.mxu0 0.0
        %392 = vmatpush1.msra.mxu0 0.0
        %393 = vmatprep.subr.mxu0 0.0
        %394 = vmatpush1.msra.mxu0 0.0
        %395 = vmatprep.subr.mxu0 0.0
        %396 = vmatpush1.msra.mxu0 0.0
        %397 = vmatprep.subr.mxu0 0.0
        %398 = vmatpush1.msra.mxu0 0.0
        %399 = vmatprep.subr.mxu0 0.0
        %400 = vmatpush1.msra.mxu0 0.0
        %401 = vmatprep.subr.mxu0 0.0
        %402 = vmatpush1.msra.mxu0 0.0
        %403 = vmatprep.subr.mxu0 0.0
        %404 = vmatpush1.msra.mxu0 0.0
        %405 = vmatprep.subr.mxu0 0.0
        %406 = vmatpush1.msra.mxu0 0.0
        %407 = vmatprep.subr.mxu0 0.0
        %408 = vmatpush1.msra.mxu0 0.0
        %409 = vmatprep.subr.mxu0 0.0
        %410 = vmatpush1.msra.mxu0 0.0
        %411 = vmatprep.subr.mxu0 0.0
        %412 = vmatpush1.msra.mxu0 0.0
        %413 = vmatprep.subr.mxu0 0.0
        %414 = vmatpush1.msra.mxu0 0.0
        %415 = vmatprep.subr.mxu0 0.0
        %416 = vmatpush1.msra.mxu0 0.0
        %417 = vmatprep.subr.mxu0 0.0
        %418 = vmatpush1.msra.mxu0 0.0
        %419 = vmatprep.subr.mxu0 0.0
        %420 = vmatpush1.msra.mxu0 0.0
        %421 = vmatprep.subr.mxu0 0.0
        %422 = vmatpush1.msra.mxu0 0.0
        %423 = vmatprep.subr.mxu0 0.0
        %424 = vmatpush1.msra.mxu0 0.0
        %425 = vmatprep.subr.mxu0 0.0
        %426 = vmatpush1.msra.mxu0 0.0
        %427 = vmatprep.subr.mxu0 0.0
        %428 = vmatpush1.msra.mxu0 0.0
        %429 = vmatprep.subr.mxu0 0.0
        %430 = vmatpush1.msra.mxu0 0.0
        %431 = vmatprep.subr.mxu0 0.0
        %432 = vmatpush1.msra.mxu0 0.0
        %433 = vmatprep.subr.mxu0 0.0
        %434 = vmatpush1.msra.mxu0 0.0
        %435 = vmatprep.subr.mxu0 0.0
        %436 = vmatpush1.msra.mxu0 0.0
        %437 = vmatprep.mubr.f32.mxu0 0.0
        %438 = vmatmul.mubr.f32.gmra.mrb[0].mxu0 %v368
        %v439 = vpop.f32.mrb[0].mxu0
        %v440 = vadd.f32 0.0, %v439
        %v441 = vpop.f32.mrb[0].mxu0
        %442 = vmatprep.mubr.f32.mxu0 0.0
        %443 = vmatmul.mubr.f32.gmra.mrb[0].mxu0 %v371
        %v444 = vpop.f32.mrb[0].mxu0
        %v445 = vadd.f32 0.0, %v444
        %v446 = vpop.f32.mrb[0].mxu0
        %447 = vdwg.mxu0
        %s448 = scalar_lea.vmem [#allocation2], 4
        %v449 = vld [vmem:[%s448] sm:$0x1]
        %v450 = vld [vmem:[%s448 + $0x1] sm:$0x1]
        %vm451 = vcmask 130048
        %v452 = vsel %vm451, %v440, 0.0
        %v453 = vsel %vm451, %v445, 0.0
        %v454 = vadd.f32 %v452, %v453
        %v455 = vrot.slane %v454, 4
        %v456 = vadd.f32 %v454, %v455
        %v457 = vrot.slane %v456, 2
        %v458 = vadd.f32 %v456, %v457
        %v459 = vrot.slane %v458, 1
        %v460 = vadd.f32 %v458, %v459
        %v461 = vmul.f32 %v460, %v200
        %v462 = vsub.f32 %v440, %v461
        %v463 = vsub.f32 %v445, %v461
        %v464 = vmul.f32 %v462, %v462
        %v465 = vmul.f32 %v463, %v463
        %v466 = vsel %vm451, %v464, 0.0
        %v467 = vsel %vm451, %v465, 0.0
        %v468 = vadd.f32 %v466, %v467
        %v469 = vrot.slane %v468, 4
        %v470 = vadd.f32 %v468, %v469
        %v471 = vrot.slane %v470, 2
        %v472 = vadd.f32 %v470, %v471
        %v473 = vrot.slane %v472, 1
        %v474 = vadd.f32 %v472, %v473
        %v475 = vmul.f32 %v474, %v200
        %v476 = vadd.f32 %v475, 1e-06
        %v477 = vrsqrt.pop %v476
        %v478 = vmul.f32 %v449, %v477
        %v479 = vmul.f32 %v461, %v478
        %v480 = vsub.f32 %v450, %v479
        %v481 = vlaneseq
        %v482 = vshrl.u32 %v481, 7
        %v483 = vsub.s32 0, %v482
        %v484 = vrot.slane %v478, %v483
        %v485 = vmul.f32 %v440, %v484
        %v486 = vmul.f32 %v445, %v484
        %v487 = vlaneseq
        %v488 = vshrl.u32 %v487, 7
        %v489 = vsub.s32 0, %v488
        %v490 = vrot.slane %v480, %v489
        %v491 = vadd.f32 %v485, %v490
        %v492 = vadd.f32 %v486, %v490
        %v493 = vmax.f32 %v491, 0.0
        %v494 = vmax.f32 %v492, 0.0
        %s495 = scalar_lea.vmem %s1, 64
        %v496 = vld [vmem:[%s495] sm:$0xff]
        %v497 = vld [vmem:[%s495 + $0x8] sm:$0xff]
        %v499 = vsel %vm451, %v493, 0
        %v502 = vsel %vm451, %v494, 0
        %504 = vmatprep.subr.mxu0 0.0
        %505 = vmatpush1.msra.mxu0 %v496
        %506 = vmatprep.subr.mxu0 0.0
        %507 = vmatpush1.msra.mxu0 %v497
        %508 = vmatprep.subr.mxu0 0.0
        %509 = vmatpush1.msra.mxu0 0.0
        %510 = vmatprep.subr.mxu0 0.0
        %511 = vmatpush1.msra.mxu0 0.0
        %512 = vmatprep.subr.mxu0 0.0
        %513 = vmatpush1.msra.mxu0 0.0
        %514 = vmatprep.subr.mxu0 0.0
        %515 = vmatpush1.msra.mxu0 0.0
        %516 = vmatprep.subr.mxu0 0.0
        %517 = vmatpush1.msra.mxu0 0.0
        %518 = vmatprep.subr.mxu0 0.0
        %519 = vmatpush1.msra.mxu0 0.0
        %520 = vmatprep.subr.mxu0 0.0
        %521 = vmatpush1.msra.mxu0 0.0
        %522 = vmatprep.subr.mxu0 0.0
        %523 = vmatpush1.msra.mxu0 0.0
        %524 = vmatprep.subr.mxu0 0.0
        %525 = vmatpush1.msra.mxu0 0.0
        %526 = vmatprep.subr.mxu0 0.0
        %527 = vmatpush1.msra.mxu0 0.0
        %528 = vmatprep.subr.mxu0 0.0
        %529 = vmatpush1.msra.mxu0 0.0
        %530 = vmatprep.subr.mxu0 0.0
        %531 = vmatpush1.msra.mxu0 0.0
        %532 = vmatprep.subr.mxu0 0.0
        %533 = vmatpush1.msra.mxu0 0.0
        %534 = vmatprep.subr.mxu0 0.0
        %535 = vmatpush1.msra.mxu0 0.0
        %536 = vmatprep.subr.mxu0 0.0
        %537 = vmatpush1.msra.mxu0 0.0
        %538 = vmatprep.subr.mxu0 0.0
        %539 = vmatpush1.msra.mxu0 0.0
        %540 = vmatprep.subr.mxu0 0.0
        %541 = vmatpush1.msra.mxu0 0.0
        %542 = vmatprep.subr.mxu0 0.0
        %543 = vmatpush1.msra.mxu0 0.0
        %544 = vmatprep.subr.mxu0 0.0
        %545 = vmatpush1.msra.mxu0 0.0
        %546 = vmatprep.subr.mxu0 0.0
        %547 = vmatpush1.msra.mxu0 0.0
        %548 = vmatprep.subr.mxu0 0.0
        %549 = vmatpush1.msra.mxu0 0.0
        %550 = vmatprep.subr.mxu0 0.0
        %551 = vmatpush1.msra.mxu0 0.0
        %552 = vmatprep.subr.mxu0 0.0
        %553 = vmatpush1.msra.mxu0 0.0
        %554 = vmatprep.subr.mxu0 0.0
        %555 = vmatpush1.msra.mxu0 0.0
        %556 = vmatprep.subr.mxu0 0.0
        %557 = vmatpush1.msra.mxu0 0.0
        %558 = vmatprep.subr.mxu0 0.0
        %559 = vmatpush1.msra.mxu0 0.0
        %560 = vmatprep.subr.mxu0 0.0
        %561 = vmatpush1.msra.mxu0 0.0
        %562 = vmatprep.subr.mxu0 0.0
        %563 = vmatpush1.msra.mxu0 0.0
        %564 = vmatprep.subr.mxu0 0.0
        %565 = vmatpush1.msra.mxu0 0.0
        %566 = vmatprep.subr.mxu0 0.0
        %567 = vmatpush1.msra.mxu0 0.0
        %568 = vmatprep.mubr.f32.mxu0 0.0
        %569 = vmatmul.mubr.f32.gmra.mrb[0].mxu0 %v499
        %v570 = vpop.f32.mrb[0].mxu0
        %v571 = vadd.f32 0.0, %v570
        %v572 = vpop.f32.mrb[0].mxu0
        %573 = vmatprep.mubr.f32.mxu0 0.0
        %574 = vmatmul.mubr.f32.gmra.mrb[0].mxu0 %v502
        %v575 = vpop.f32.mrb[0].mxu0
        %v576 = vadd.f32 0.0, %v575
        %v577 = vpop.f32.mrb[0].mxu0
        %578 = vdwg.mxu0
        %s579 = scalar_lea.vmem [#allocation2], 6
        %v580 = vld [vmem:[%s579] sm:$0x1]
        %v581 = vld [vmem:[%s579 + $0x1] sm:$0x1]
        %v582 = vsel %vm190, %v571, 0.0
        %v583 = vsel %vm190, %v576, 0.0
        %v584 = vadd.f32 %v582, %v583
        %v585 = vrot.slane %v584, 4
        %v586 = vadd.f32 %v584, %v585
        %v587 = vrot.slane %v586, 2
        %v588 = vadd.f32 %v586, %v587
        %v589 = vrot.slane %v588, 1
        %v590 = vadd.f32 %v588, %v589
        %v591 = vmul.f32 %v590, %v200
        %v592 = vsub.f32 %v571, %v591
        %v593 = vsub.f32 %v576, %v591
        %v594 = vmul.f32 %v592, %v592
        %v595 = vmul.f32 %v593, %v593
        %v596 = vsel %vm190, %v594, 0.0
        %v597 = vsel %vm190, %v595, 0.0
        %v598 = vadd.f32 %v596, %v597
        %v599 = vrot.slane %v598, 4
        %v600 = vadd.f32 %v598, %v599
        %v601 = vrot.slane %v600, 2
        %v602 = vadd.f32 %v600, %v601
        %v603 = vrot.slane %v602, 1
        %v604 = vadd.f32 %v602, %v603
        %v605 = vmul.f32 %v604, %v200
        %v606 = vadd.f32 %v605, 1e-06
        %v607 = vrsqrt.pop %v606
        %v608 = vmul.f32 %v580, %v607
        %v609 = vmul.f32 %v591, %v608
        %v610 = vsub.f32 %v581, %v609
        %v611 = vlaneseq
        %v612 = vshrl.u32 %v611, 7
        %v613 = vsub.s32 0, %v612
        %v614 = vrot.slane %v608, %v613
        %v615 = vmul.f32 %v571, %v614
        %v616 = vmul.f32 %v576, %v614
        %v617 = vlaneseq
        %v618 = vshrl.u32 %v617, 7
        %v619 = vsub.s32 0, %v618
        %v620 = vrot.slane %v610, %v619
        %v621 = vadd.f32 %v615, %v620
        %v622 = vadd.f32 %v616, %v620
        %623 = vst.msk [vmem:[%s185] sm:$0xff] %vm190, %v621
        %624 = vst.msk [vmem:[%s185 + $0x8] sm:$0xff] %vm190, %v622
        %p625 = scmp.lt.s32.totalorder %s15, 3
        %s626 = scalar_select %p625, %s15, 3
        %s627 = smul.addr %s626, 2
        %s628 = smul.addr %s627, 8
        %s629 = scalar_lea.vmem %s3, %s628
        // Predicated region
        $region37: #{tpu_custom_call.1} parent=31 // pred_check
          %p630 = pneg %p101
        $region38: #{tpu_custom_call.1} parent=31 // pred_check_branch
          %632 = sbr.rel (%p630) target = $region40
        $region39: #{tpu_custom_call.1} parent=31 // pred_region
          _
        $region40: #{tpu_custom_call.1} parent=31 // pred_fallthru
          _
      $region32: #{tpu_custom_call.1} parent=5 // pred_fallthru
        _
      %p633 = scmp.le.s32.totalorder 2, %s10
      // Predicated region
      $region41: #{tpu_custom_call.1} parent=5 // pred_check
        %p634 = pneg %p633
      $region42: #{tpu_custom_call.1} parent=5 // pred_check_branch
        %636 = sbr.rel (%p634) target = $region44
      $region43: #{tpu_custom_call.1} parent=5 // pred_region
        %s637 = ssub.s32 %s10, 2
        // Predicated region
        $region45: #{tpu_custom_call.1} parent=43 // pred_check
          %p638 = pneg %p107
        $region46: #{tpu_custom_call.1} parent=43 // pred_check_branch
          %640 = sbr.rel (%p638) target = $region48
        $region47: #{tpu_custom_call.1} parent=43 // pred_region
          %p641 = scmp.lt.s32.totalorder %s16, 3
          %s642 = scalar_select %p641, %s16, 3
          %s643 = smul.addr %s642, 2
          %s644 = smul.addr %s643, 8
          %s645 = scalar_lea.vmem %s3, %s644
        $region48: #{tpu_custom_call.1} parent=43 // pred_fallthru
          _
      $region44: #{tpu_custom_call.1} parent=5 // pred_fallthru
        _
    $region6: #{tpu_custom_call.1} parent=1 // loop_footer
      %s14 = sadd.s32 1, %s10
    $region7: #{tpu_custom_call.1} parent=1 // loop_footer_branch
      %9 = sbr.rel target = $region3
    $region8: #{tpu_custom_call.1} parent=1 // loop_exit
      _
    %646 = vsyncpa [#allocation3], 1
    %s647 = scalar_lea.sflag [#allocation3], 1
    %648 = vsyncpa %s647, 1

</llo_original>
